<compile_context>
chip_gen: v7x
topology: tpu7x:2x2x1
jax: 0.10.0
libtpu: 0.0.40
codegen_flags: <defaults>
</compile_context>

<pallas_src>
import jax
import jax.numpy as jnp
from jax.experimental import pallas as pl
from jax.experimental.pallas import tpu as pltpu


def _round_up(x: int, m: int) -> int:
    return (x + m - 1) // m * m


def tfc_kernel(x_ref, w1_ref, b1_ref, w2_ref, b2_ref, o_ref):
    x = x_ref[...]                       # (tb, K1)  f32
    w1 = w1_ref[...]                     # (K1, Hw)  f32
    k1 = x.shape[1]                      # static, tiny

    # --- Layer 1 on the VPU: K is tiny; the MXU would waste the systolic
    #     array.  Bias folded into the accumulator init. ---
    h = b1_ref[...] + x[:, 0:1] * w1[0:1, :]          # (tb, Hw) broadcast-FMA
    for k in range(1, k1):                             # static unroll
        h = h + x[:, k:k + 1] * w1[k:k + 1, :]
    h = jnp.maximum(h, 0.0)                            # f32 ReLU epilogue

    # --- Layer 2 on the MXU: (tb, Hw) @ (Hw, Ow), bf16 in / f32 acc ---
    y = jnp.dot(h.astype(w2_ref.dtype), w2_ref[...],
                preferred_element_type=jnp.float32)
    o_ref[...] = (y + b2_ref[...]).astype(o_ref.dtype)


def prepare_tfc_params(w1, b1, w2, b2, matmul_dtype=jnp.bfloat16):
    """One-time parameter prep.

    w1: (H, Cin, 3), b1: (H,), w2: (O, H, 3), b2: (O,).
    Builds block-diagonal "packed" weights so that P = 128 // O batch rows
    share one lane-dense 128-wide output row (no zero-lane output padding).
    """
    H, cin, _ = w1.shape
    O = w2.shape[0]

    w1m = jnp.transpose(w1[:, :, 1]).astype(jnp.float32)   # (Cin, H) middle tap
    w2m = jnp.transpose(w2[:, :, 1]).astype(jnp.float32)   # (H, O)
    b1f = b1.astype(jnp.float32)
    b2f = b2.astype(jnp.float32)

    # Pack factor: P batch rows per output row when O divides 128; otherwise
    # fall back to P=1 with O padded up to a lane multiple (sliced in wrapper).
    if O < 128 and 128 % O == 0:
        P, o_pad = 128 // O, O
    else:
        P, o_pad = 1, (O if O % 128 == 0 else _round_up(O, 128))

    K1, Hw, Ow = P * cin, P * H, P * o_pad

    w1_big = jnp.zeros((K1, Hw), jnp.float32)
    w2_big = jnp.zeros((Hw, Ow), jnp.float32)
    b2_big = jnp.zeros((1, Ow), jnp.float32)
    for j in range(P):
        w1_big = w1_big.at[j * cin:(j + 1) * cin, j * H:(j + 1) * H].set(w1m)
        w2_big = w2_big.at[j * H:(j + 1) * H, j * o_pad:j * o_pad + O].set(w2m)
        b2_big = b2_big.at[:, j * o_pad:j * o_pad + O].set(b2f[None, :])
    b1_big = jnp.tile(b1f[None, :], (1, P))                # (1, Hw)
    w2_big = w2_big.astype(matmul_dtype)

    return dict(w1_big=w1_big, b1_big=b1_big, w2_big=w2_big, b2_big=b2_big,
                w1m=w1m, b1=b1f, w2m=w2m, b2=b2f,
                cin=cin, H=H, O=O, o_pad=o_pad, P=P)


def tfc_forward(x, params, *, tile_b=1024, xla_fastpath_max_batch=256,
                out_dtype=None):
    """x: (B, input_dim) f32; params from prepare_tfc_params.

    tile_b: batch rows per grid step (sweep first; try 2048 on v7x).
    xla_fastpath_max_batch: below this B, skip Pallas (launch-latency bound).
    out_dtype: e.g. jnp.bfloat16 to halve output HBM traffic; default x.dtype.
    """
    assert x.ndim == 2, "fused TFC path assumes (B, input_dim) inputs (seq length 1)"
    out_dtype = out_dtype or x.dtype
    B, cin = x.shape
    assert cin == params["cin"]
    O = params["O"]

    # ---- Small-batch fast path: plain XLA, no kernel launch overhead. ----
    if B <= xla_fastpath_max_batch:
        h = jnp.maximum(x @ params["w1m"] + params["b1"], 0.0)
        return (h @ params["w2m"] + params["b2"]).astype(out_dtype)

    P, o_pad = params["P"], params["o_pad"]
    w1_big, b1_big = params["w1_big"], params["b1_big"]
    w2_big, b2_big = params["w2_big"], params["b2_big"]
    K1, Hw = w1_big.shape
    Ow = w2_big.shape[1]

    # Pad batch only to a small quantum (16 sublanes * pack factor), then pack
    # P consecutive rows per kernel row via a contiguous (free) reshape.
    quantum = 16 * P
    b_pad = _round_up(B, quantum)
    xp = x if b_pad == B else jnp.pad(x, ((0, b_pad - B), (0, 0)))
    bp = b_pad // P                       # packed rows
    xw = xp.reshape(bp, K1)

    # Packed-row tile: largest multiple of 16 that divides bp, capped at
    # tile_b // P  ->  tile divides the grid exactly (no over-padding).
    m = bp // 16
    d_max = max(1, min(max(tile_b, quantum) // (16 * P), m))
    d = next(dd for dd in range(d_max, 0, -1) if m % dd == 0)
    tb = 16 * d

    out = pl.pallas_call(
        tfc_kernel,
        out_shape=jax.ShapeDtypeStruct((bp, Ow), out_dtype),
        grid=(bp // tb,),
        in_specs=[
            pl.BlockSpec((tb, K1), lambda i: (i, 0)),   # x: tiled over batch
            pl.BlockSpec((K1, Hw), lambda i: (0, 0)),   # w1: VMEM-resident
            pl.BlockSpec((1, Hw), lambda i: (0, 0)),    # b1
            pl.BlockSpec((Hw, Ow), lambda i: (0, 0)),   # w2
            pl.BlockSpec((1, Ow), lambda i: (0, 0)),    # b2
        ],
        out_specs=pl.BlockSpec((tb, Ow), lambda i: (i, 0)),
        compiler_params=pltpu.CompilerParams(
            dimension_semantics=("parallel",)),
    )(xw, w1_big, b1_big, w2_big, b2_big)

    # Unpack: contiguous reshape (free); only slice what was actually padded.
    y = out.reshape(b_pad, o_pad)
    if o_pad != O:
        y = y[:, :O]
    if b_pad != B:
        y = y[:B]
    return y


if __name__ == "__main__":
    Cin, H, O = 3, 64, 64

    key = jax.random.PRNGKey(0)
    kx, k2, k3, k4, k5, k6 = jax.random.split(key, 6)
    w1 = jax.random.normal(k2, (H, Cin, 3), jnp.float32) * 0.1   # Conv1d(3->64, k=3)
    b1 = jax.random.normal(k3, (H,),        jnp.float32) * 0.1
    w2 = jax.random.normal(k4, (O, H, 3),   jnp.float32) * 0.1   # Conv1d(64->64, k=3)
    b2 = jax.random.normal(k5, (O,),        jnp.float32) * 0.1

    params = prepare_tfc_params(w1, b1, w2, b2)                  # hoisted, one-time

    def ref(xv):
        h = jnp.maximum(xv @ jnp.transpose(w1[:, :, 1]) + b1, 0.0)
        return h @ jnp.transpose(w2[:, :, 1]) + b2

    ok = True
    # Force the Pallas path (small demo batches would otherwise hit the XLA
    # fast path); B=32 exercises the no-padding case, B=13 the pad+slice case.
    for B in (32, 13):
        x = jax.random.normal(jax.random.fold_in(kx, B), (B, Cin), jnp.float32)
        out = jax.block_until_ready(
            tfc_forward(x, params, xla_fastpath_max_batch=0))
        assert out.shape == (B, O)
        # bf16 MXU operands with f32 accumulation -> loose-ish tolerance.
        ok = ok and bool(jnp.allclose(out, ref(x), atol=1e-2, rtol=1e-2))

    # Also exercise the XLA small-batch fast path once.
    x_small = jax.random.normal(k6, (8, Cin), jnp.float32)
    out_small = jax.block_until_ready(tfc_forward(x_small, params))
    ok = ok and bool(jnp.allclose(out_small, ref(x_small), atol=1e-2, rtol=1e-2))

    assert ok
    print("KERNEL_OK")
</pallas_src>

<mosaic_0001>
module attributes {stable_mosaic.version = 11 : i64} {
  func.func @tfc_kernel(%arg0: i32, %arg1: memref<16x6xf32, #tpu.memory_space<vmem>>, %arg2: memref<6x128xf32, #tpu.memory_space<vmem>>, %arg3: memref<1x128xf32, #tpu.memory_space<vmem>>, %arg4: memref<128x128xbf16, #tpu.memory_space<vmem>>, %arg5: memref<1x128xf32, #tpu.memory_space<vmem>>, %arg6: memref<16x128xf32, #tpu.memory_space<vmem>>) attributes {dimension_semantics = [#tpu.dimension_semantics<parallel>], iteration_bounds = array<i64: 1>, scalar_prefetch = 0 : i64, scratch_operands = 0 : i64, tpu.core_type = #tpu.core_type<tc>, window_params = [{transform_indices = @transform_0, window_bounds = array<i64: 16, 6>}, {pipeline_mode = #tpu.pipeline_mode<synchronous>, transform_indices = @transform_1, window_bounds = array<i64: 6, 128>}, {pipeline_mode = #tpu.pipeline_mode<synchronous>, transform_indices = @transform_2, window_bounds = array<i64: 1, 128>}, {pipeline_mode = #tpu.pipeline_mode<synchronous>, transform_indices = @transform_3, window_bounds = array<i64: 128, 128>}, {pipeline_mode = #tpu.pipeline_mode<synchronous>, transform_indices = @transform_4, window_bounds = array<i64: 1, 128>}, {transform_indices = @transform_5, window_bounds = array<i64: 16, 128>}]} {
    %c0 = arith.constant 0 : index
    %c0_0 = arith.constant 0 : index
    %0 = vector.load %arg1[%c0, %c0_0] : memref<16x6xf32, #tpu.memory_space<vmem>>, vector<16x6xf32>
    %c0_1 = arith.constant 0 : index
    %c0_2 = arith.constant 0 : index
    %1 = vector.load %arg2[%c0_1, %c0_2] : memref<6x128xf32, #tpu.memory_space<vmem>>, vector<6x128xf32>
    %c0_3 = arith.constant 0 : index
    %c0_4 = arith.constant 0 : index
    %2 = vector.load %arg3[%c0_3, %c0_4] : memref<1x128xf32, #tpu.memory_space<vmem>>, vector<1x128xf32>
    %3 = vector.extract_strided_slice %0 {offsets = [0, 0], sizes = [16, 1], strides = [1, 1]} : vector<16x6xf32> to vector<16x1xf32>
    %4 = vector.extract_strided_slice %1 {offsets = [0, 0], sizes = [1, 128], strides = [1, 1]} : vector<6x128xf32> to vector<1x128xf32>
    %5 = vector.broadcast %3 : vector<16x1xf32> to vector<16x128xf32>
    %6 = vector.broadcast %4 : vector<1x128xf32> to vector<16x128xf32>
    %7 = arith.mulf %5, %6 : vector<16x128xf32>
    %8 = vector.broadcast %2 : vector<1x128xf32> to vector<16x128xf32>
    %9 = arith.addf %8, %7 : vector<16x128xf32>
    %10 = vector.extract_strided_slice %0 {offsets = [0, 1], sizes = [16, 1], strides = [1, 1]} : vector<16x6xf32> to vector<16x1xf32>
    %11 = vector.extract_strided_slice %1 {offsets = [1, 0], sizes = [1, 128], strides = [1, 1]} : vector<6x128xf32> to vector<1x128xf32>
    %12 = vector.broadcast %10 : vector<16x1xf32> to vector<16x128xf32>
    %13 = vector.broadcast %11 : vector<1x128xf32> to vector<16x128xf32>
    %14 = arith.mulf %12, %13 : vector<16x128xf32>
    %15 = arith.addf %9, %14 : vector<16x128xf32>
    %16 = vector.extract_strided_slice %0 {offsets = [0, 2], sizes = [16, 1], strides = [1, 1]} : vector<16x6xf32> to vector<16x1xf32>
    %17 = vector.extract_strided_slice %1 {offsets = [2, 0], sizes = [1, 128], strides = [1, 1]} : vector<6x128xf32> to vector<1x128xf32>
    %18 = vector.broadcast %16 : vector<16x1xf32> to vector<16x128xf32>
    %19 = vector.broadcast %17 : vector<1x128xf32> to vector<16x128xf32>
    %20 = arith.mulf %18, %19 : vector<16x128xf32>
    %21 = arith.addf %15, %20 : vector<16x128xf32>
    %22 = vector.extract_strided_slice %0 {offsets = [0, 3], sizes = [16, 1], strides = [1, 1]} : vector<16x6xf32> to vector<16x1xf32>
    %23 = vector.extract_strided_slice %1 {offsets = [3, 0], sizes = [1, 128], strides = [1, 1]} : vector<6x128xf32> to vector<1x128xf32>
    %24 = vector.broadcast %22 : vector<16x1xf32> to vector<16x128xf32>
    %25 = vector.broadcast %23 : vector<1x128xf32> to vector<16x128xf32>
    %26 = arith.mulf %24, %25 : vector<16x128xf32>
    %27 = arith.addf %21, %26 : vector<16x128xf32>
    %28 = vector.extract_strided_slice %0 {offsets = [0, 4], sizes = [16, 1], strides = [1, 1]} : vector<16x6xf32> to vector<16x1xf32>
    %29 = vector.extract_strided_slice %1 {offsets = [4, 0], sizes = [1, 128], strides = [1, 1]} : vector<6x128xf32> to vector<1x128xf32>
    %30 = vector.broadcast %28 : vector<16x1xf32> to vector<16x128xf32>
    %31 = vector.broadcast %29 : vector<1x128xf32> to vector<16x128xf32>
    %32 = arith.mulf %30, %31 : vector<16x128xf32>
    %33 = arith.addf %27, %32 : vector<16x128xf32>
    %34 = vector.extract_strided_slice %0 {offsets = [0, 5], sizes = [16, 1], strides = [1, 1]} : vector<16x6xf32> to vector<16x1xf32>
    %35 = vector.extract_strided_slice %1 {offsets = [5, 0], sizes = [1, 128], strides = [1, 1]} : vector<6x128xf32> to vector<1x128xf32>
    %36 = vector.broadcast %34 : vector<16x1xf32> to vector<16x128xf32>
    %37 = vector.broadcast %35 : vector<1x128xf32> to vector<16x128xf32>
    %38 = arith.mulf %36, %37 : vector<16x128xf32>
    %39 = arith.addf %33, %38 : vector<16x128xf32>
    %cst = arith.constant 0.000000e+00 : f32
    %40 = vector.broadcast %cst : f32 to vector<16x128xf32>
    %41 = arith.maximumf %39, %40 : vector<16x128xf32>
    %42 = arith.truncf %41 : vector<16x128xf32> to vector<16x128xbf16>
    %c0_5 = arith.constant 0 : index
    %c0_6 = arith.constant 0 : index
    %43 = vector.load %arg4[%c0_5, %c0_6] : memref<128x128xbf16, #tpu.memory_space<vmem>>, vector<128x128xbf16>
    %cst_7 = arith.constant dense<0.000000e+00> : vector<16x128xf32>
    %44 = tpu.matmul %42, %43, %cst_7 {dimension_numbers = #tpu.dot_dimension_numbers<[1], [0], [0], [1], [0, 0, 1, 1], [], []>} : vector<16x128xbf16>, vector<128x128xbf16>, vector<16x128xf32> -> vector<16x128xf32>
    %c0_8 = arith.constant 0 : index
    %c0_9 = arith.constant 0 : index
    %45 = vector.load %arg5[%c0_8, %c0_9] : memref<1x128xf32, #tpu.memory_space<vmem>>, vector<1x128xf32>
    %46 = vector.broadcast %45 : vector<1x128xf32> to vector<16x128xf32>
    %47 = arith.addf %44, %46 : vector<16x128xf32>
    %c0_10 = arith.constant 0 : index
    %c0_11 = arith.constant 0 : index
    %48 = vector.load %arg6[%c0_10, %c0_11] : memref<16x128xf32, #tpu.memory_space<vmem>>, vector<16x128xf32>
    tpu.vector_store %arg6[%c0_10, %c0_11], %47 {strides = array<i32>} : memref<16x128xf32, #tpu.memory_space<vmem>>, vector<16x128xf32>,
    return
  }
  func.func @transform_0(%arg0: i32) -> (i32, i32) {
    %c0_i32 = arith.constant 0 : i32
    %c0_i32_0 = arith.constant 0 : i32
    return %arg0, %c0_i32 : i32, i32
  }
  func.func @transform_1(%arg0: i32) -> (i32, i32) {
    %c0_i32 = arith.constant 0 : i32
    %c0_i32_0 = arith.constant 0 : i32
    %c0_i32_1 = arith.constant 0 : i32
    return %c0_i32, %c0_i32_0 : i32, i32
  }
  func.func @transform_2(%arg0: i32) -> (i32, i32) {
    %c0_i32 = arith.constant 0 : i32
    %c0_i32_0 = arith.constant 0 : i32
    %c0_i32_1 = arith.constant 0 : i32
    return %c0_i32, %c0_i32_0 : i32, i32
  }
  func.func @transform_3(%arg0: i32) -> (i32, i32) {
    %c0_i32 = arith.constant 0 : i32
    %c0_i32_0 = arith.constant 0 : i32
    %c0_i32_1 = arith.constant 0 : i32
    return %c0_i32, %c0_i32_0 : i32, i32
  }
  func.func @transform_4(%arg0: i32) -> (i32, i32) {
    %c0_i32 = arith.constant 0 : i32
    %c0_i32_0 = arith.constant 0 : i32
    %c0_i32_1 = arith.constant 0 : i32
    return %c0_i32, %c0_i32_0 : i32, i32
  }
  func.func @transform_5(%arg0: i32) -> (i32, i32) {
    %c0_i32 = arith.constant 0 : i32
    %c0_i32_0 = arith.constant 0 : i32
    return %arg0, %c0_i32 : i32, i32
  }
}

</mosaic_0001>

<llo_original>
// kernel: tpu_custom_call.1
$region0: #{tpu_custom_call.1}
  #allocation0 [shape = 'u32[]', space=smem, size = 0x4, offset = 0x4, fixed_abs, tag = 'smem constant byte address 0x4 - core index']
  #allocation1 [shape = 'u32[144,128]{1,0:T(1,128)}', space=vmem, size = 0x12000, scoped, tag = 'internal scratch']
  %s0 = inlined_call_operand.vmem [shape: f32[16,6], index: 0, kind: input, shape index: {}]
  %s1 = inlined_call_operand.vmem [shape: f32[6,128], index: 1, kind: input, shape index: {}]
  %s2 = inlined_call_operand.vmem [shape: f32[1,128], index: 2, kind: input, shape index: {}]
  %s3 = inlined_call_operand.hbm [shape: bf16[128,128], index: 3, kind: input, shape index: {}]
  %s4 = inlined_call_operand.vmem [shape: f32[1,128], index: 4, kind: input, shape index: {}]
  %s5 = inlined_call_operand.hbm [shape: f32[16,128], index: 5, kind: output, shape index: {}]
  %s6 = sld [smem:[#allocation0]]
  $region34: #{tpu_custom_call.1} parent=0
    _
  %s8 = ssub.s32 1, %s6
  %s9 = scalar_select 0, %s8, %s6
  $region1: #{tpu_custom_call.1} parent=0
    #allocation2 [shape = 'u8[32768]{0}', space=vmem, size = 0x8000, scoped, tag = 'input window, operand 3, single buffered']
    #allocation3 [shape = 's32[1]{0}', space=sflag, size = 0x4, scoped, tag = 'scoped memory for tpu_custom_call.1']
    #allocation4 [shape = 's32[1]{0}', space=sflag, size = 0x4, scoped, tag = 'scoped memory for tpu_custom_call.1']
    #allocation5 [shape = 'u8[8192]{0}', space=vmem, size = 0x2000, scoped, tag = 'output window, operand 0, single buffered']
    %10 = vsyncpa [#allocation3], 0
    %11 = vsyncpa [#allocation4], 0
    // Predicated region
    $region2: #{tpu_custom_call.1} parent=1 // pred_check
      _
    $region3: #{tpu_custom_call.1} parent=1 // pred_check_branch
      %13 = sbr.rel (0) target = $region5
    $region4: #{tpu_custom_call.1} parent=1 // pred_region
      _
    $region5: #{tpu_custom_call.1} parent=1 // pred_fallthru
      _
    // Predicated region
    $region6: #{tpu_custom_call.1} parent=1 // pred_check
      _
    $region7: #{tpu_custom_call.1} parent=1 // pred_check_branch
      %15 = sbr.rel (0) target = $region9
    $region8: #{tpu_custom_call.1} parent=1 // pred_region
      _
    $region9: #{tpu_custom_call.1} parent=1 // pred_fallthru
      _
    // Predicated region
    $region10: #{tpu_custom_call.1} parent=1 // pred_check
      _
    $region11: #{tpu_custom_call.1} parent=1 // pred_check_branch
      %17 = sbr.rel (0) target = $region13
    $region12: #{tpu_custom_call.1} parent=1 // pred_region
      _
    $region13: #{tpu_custom_call.1} parent=1 // pred_fallthru
      _
    // Predicated region
    $region14: #{tpu_custom_call.1} parent=1 // pred_check
      _
    $region15: #{tpu_custom_call.1} parent=1 // pred_check_branch
      %19 = sbr.rel (0) target = $region17
    $region16: #{tpu_custom_call.1} parent=1 // pred_region
      %s21 = ssub.s32 1024, 1024
      %22 = vsyncadd [#allocation3], %s21
      %s23 = sshll.u32 [#allocation2], 4
      %s24 = int_to_ptr.vmem [resolvable:$true] %s23
      %29 = dma.hbm_to_vmem [thread:$0]  %s3, 1024, %s24, [#allocation3], 64, 64, 4
    $region17: #{tpu_custom_call.1} parent=1 // pred_fallthru
      _
    // Predicated region
    $region18: #{tpu_custom_call.1} parent=1 // pred_check
      _
    $region19: #{tpu_custom_call.1} parent=1 // pred_check_branch
      %31 = sbr.rel (0) target = $region21
    $region20: #{tpu_custom_call.1} parent=1 // pred_region
      _
    $region21: #{tpu_custom_call.1} parent=1 // pred_fallthru
      _
    // Predicated region
    $region22: #{tpu_custom_call.1} parent=1 // pred_check
      _
    $region23: #{tpu_custom_call.1} parent=1 // pred_check_branch
      %33 = sbr.rel (0) target = $region25
    $region24: #{tpu_custom_call.1} parent=1 // pred_region
      %34 = dma.done [#allocation3], 1024
    $region25: #{tpu_custom_call.1} parent=1 // pred_fallthru
      _
    %v36 = vld [vmem:[%s0] sm:$0xff]
    %v37 = vld [vmem:[%s0 + $0x8] sm:$0xff]
    %v38 = vld [vmem:[%s1] sm:$0x3f]
    %v39 = vld [vmem:[%s2] sm:$0x1]
    %41 = vset.pattern.permute.xlu0 0
    %42 = vperm.xlu0 %41, %v36
    %v43 = vpop.permute.xlu0 %42
    %46 = vset.pattern.permute.xlu0 0
    %47 = vperm.xlu0 %46, %v37
    %v48 = vpop.permute.xlu0 %47
    %v50 = vlaneseq
    %v51 = vshrl.u32 %v50, 7
    %v52 = vsub.s32 0, %v51
    %v53 = vrot.slane %v38, %v52
    %v54 = vmul.f32 %v43, %v53
    %v55 = vmul.f32 %v48, %v53
    %v57 = vlaneseq
    %v58 = vshrl.u32 %v57, 7
    %v59 = vsub.s32 0, %v58
    %v60 = vrot.slane %v39, %v59
    %v62 = vadd.f32 %v60, %v54
    %v63 = vadd.f32 %v60, %v55
    %64 = vset.pattern.permute.xlu0 1
    %65 = vperm.xlu0 %64, %v36
    %v66 = vpop.permute.xlu0 %65
    %68 = vset.pattern.permute.xlu0 1
    %69 = vperm.xlu0 %68, %v37
    %v70 = vpop.permute.xlu0 %69
    %v72 = vlaneseq
    %v73 = vshrl.u32 %v72, 7
    %v74 = vsub.s32 1, %v73
    %v75 = vrot.slane %v38, %v74
    %v76 = vmul.f32 %v66, %v75
    %v77 = vmul.f32 %v70, %v75
    %v78 = vadd.f32 %v62, %v76
    %v79 = vadd.f32 %v63, %v77
    %80 = vset.pattern.permute.xlu0 2
    %81 = vperm.xlu0 %80, %v36
    %v82 = vpop.permute.xlu0 %81
    %84 = vset.pattern.permute.xlu0 2
    %85 = vperm.xlu0 %84, %v37
    %v86 = vpop.permute.xlu0 %85
    %v88 = vlaneseq
    %v89 = vshrl.u32 %v88, 7
    %v90 = vsub.s32 2, %v89
    %v91 = vrot.slane %v38, %v90
    %v92 = vmul.f32 %v82, %v91
    %v93 = vmul.f32 %v86, %v91
    %v94 = vadd.f32 %v78, %v92
    %v95 = vadd.f32 %v79, %v93
    %96 = vset.pattern.permute.xlu0 3
    %97 = vperm.xlu0 %96, %v36
    %v98 = vpop.permute.xlu0 %97
    %100 = vset.pattern.permute.xlu0 3
    %101 = vperm.xlu0 %100, %v37
    %v102 = vpop.permute.xlu0 %101
    %v104 = vlaneseq
    %v105 = vshrl.u32 %v104, 7
    %v106 = vsub.s32 3, %v105
    %v107 = vrot.slane %v38, %v106
    %v108 = vmul.f32 %v98, %v107
    %v109 = vmul.f32 %v102, %v107
    %v110 = vadd.f32 %v94, %v108
    %v111 = vadd.f32 %v95, %v109
    %112 = vset.pattern.permute.xlu0 4
    %113 = vperm.xlu0 %112, %v36
    %v114 = vpop.permute.xlu0 %113
    %116 = vset.pattern.permute.xlu0 4
    %117 = vperm.xlu0 %116, %v37
    %v118 = vpop.permute.xlu0 %117
    %v120 = vlaneseq
    %v121 = vshrl.u32 %v120, 7
    %v122 = vsub.s32 4, %v121
    %v123 = vrot.slane %v38, %v122
    %v124 = vmul.f32 %v114, %v123
    %v125 = vmul.f32 %v118, %v123
    %v126 = vadd.f32 %v110, %v124
    %v127 = vadd.f32 %v111, %v125
    %128 = vset.pattern.permute.xlu0 5
    %129 = vperm.xlu0 %128, %v36
    %v130 = vpop.permute.xlu0 %129
    %132 = vset.pattern.permute.xlu0 5
    %133 = vperm.xlu0 %132, %v37
    %v134 = vpop.permute.xlu0 %133
    %v136 = vlaneseq
    %v137 = vshrl.u32 %v136, 7
    %v138 = vsub.s32 5, %v137
    %v139 = vrot.slane %v38, %v138
    %v140 = vmul.f32 %v130, %v139
    %v141 = vmul.f32 %v134, %v139
    %v142 = vadd.f32 %v126, %v140
    %v143 = vadd.f32 %v127, %v141
    %v144 = vmax.f32 %v142, 0.0
    %v145 = vmax.f32 %v143, 0.0
    %v146 = vpack.c.bf16 %v145, %v144
    %v147 = vld [vmem:[#allocation2] sm:$0xf]
    %v148 = vld [vmem:[#allocation2 + $0x4] sm:$0xf]
    %v149 = vld [vmem:[#allocation2 + $0x8] sm:$0xf]
    %v150 = vld [vmem:[#allocation2 + $0xc] sm:$0xf]
    %v151 = vld [vmem:[#allocation2 + $0x10] sm:$0xf]
    %v152 = vld [vmem:[#allocation2 + $0x14] sm:$0xf]
    %v153 = vld [vmem:[#allocation2 + $0x18] sm:$0xf]
    %v154 = vld [vmem:[#allocation2 + $0x1c] sm:$0xf]
    %v155 = vld [vmem:[#allocation2 + $0x20] sm:$0xf]
    %v156 = vld [vmem:[#allocation2 + $0x24] sm:$0xf]
    %v157 = vld [vmem:[#allocation2 + $0x28] sm:$0xf]
    %v158 = vld [vmem:[#allocation2 + $0x2c] sm:$0xf]
    %v159 = vld [vmem:[#allocation2 + $0x30] sm:$0xf]
    %v160 = vld [vmem:[#allocation2 + $0x34] sm:$0xf]
    %v161 = vld [vmem:[#allocation2 + $0x38] sm:$0xf]
    %v162 = vld [vmem:[#allocation2 + $0x3c] sm:$0xf]
    %v163 = vld [vmem:[%s4] sm:$0x1]
    %v165 = vlaneseq
    %v166 = vshrl.u32 %v165, 7
    %v167 = vsub.s32 0, %v166
    %v168 = vrot.slane %v163, %v167
    %v186 = vunpack.c.l.b16 %v147
    %v187 = vunpack.c.l.b16 %v148
    %v188 = vunpack.c.l.b16 %v149
    %v189 = vunpack.c.l.b16 %v150
    %v190 = vunpack.c.l.b16 %v151
    %v191 = vunpack.c.l.b16 %v152
    %v192 = vunpack.c.l.b16 %v153
    %v193 = vunpack.c.l.b16 %v154
    %v194 = vunpack.c.l.b16 %v155
    %v195 = vunpack.c.l.b16 %v156
    %v196 = vunpack.c.l.b16 %v157
    %v197 = vunpack.c.l.b16 %v158
    %v198 = vunpack.c.l.b16 %v159
    %v199 = vunpack.c.l.b16 %v160
    %v200 = vunpack.c.l.b16 %v161
    %v201 = vunpack.c.l.b16 %v162
    %v202 = vpack.c.b16 %v187, %v186
    %v203 = vpack.c.b16 %v189, %v188
    %v204 = vpack.c.b16 %v191, %v190
    %v205 = vpack.c.b16 %v193, %v192
    %v206 = vpack.c.b16 %v195, %v194
    %v207 = vpack.c.b16 %v197, %v196
    %v208 = vpack.c.b16 %v199, %v198
    %v209 = vpack.c.b16 %v201, %v200
    %218 = vmatprep.subr.bf16.mxu0 0
    %219 = vmatpush1.bf16.msra.mxu0 %v202
    %220 = vmatprep.subr.bf16.mxu0 0
    %221 = vmatpush1.bf16.msra.mxu0 %v203
    %222 = vmatprep.subr.bf16.mxu0 0
    %223 = vmatpush1.bf16.msra.mxu0 %v204
    %224 = vmatprep.subr.bf16.mxu0 0
    %225 = vmatpush1.bf16.msra.mxu0 %v205
    %226 = vmatprep.subr.bf16.mxu0 0
    %227 = vmatpush1.bf16.msra.mxu0 %v206
    %228 = vmatprep.subr.bf16.mxu0 0
    %229 = vmatpush1.bf16.msra.mxu0 %v207
    %230 = vmatprep.subr.bf16.mxu0 0
    %231 = vmatpush1.bf16.msra.mxu0 %v208
    %232 = vmatprep.subr.bf16.mxu0 0
    %233 = vmatpush1.bf16.msra.mxu0 %v209
    %234 = vmatprep.subr.bf16.mxu0 0
    %235 = vmatpush1.bf16.msra.mxu0 0
    %236 = vmatprep.subr.bf16.mxu0 0
    %237 = vmatpush1.bf16.msra.mxu0 0
    %238 = vmatprep.subr.bf16.mxu0 0
    %239 = vmatpush1.bf16.msra.mxu0 0
    %240 = vmatprep.subr.bf16.mxu0 0
    %241 = vmatpush1.bf16.msra.mxu0 0
    %242 = vmatprep.subr.bf16.mxu0 0
    %243 = vmatpush1.bf16.msra.mxu0 0
    %244 = vmatprep.subr.bf16.mxu0 0
    %245 = vmatpush1.bf16.msra.mxu0 0
    %246 = vmatprep.subr.bf16.mxu0 0
    %247 = vmatpush1.bf16.msra.mxu0 0
    %248 = vmatprep.subr.bf16.mxu0 0
    %249 = vmatpush1.bf16.msra.mxu0 0
    %250 = vmatprep.mubr.bf16.mxu0 0
    %251 = vmatmul.mubr.bf16.gmra.mrb[0].mxu0 %v146
    %v252 = vpop.f32.mrb[0].mxu0
    %v253 = vadd.f32 %v168, %v252
    %v254 = vpop.f32.mrb[0].mxu0
    %v255 = vpop.f32.mrb[0].mxu0
    %v256 = vadd.f32 %v168, %v255
    %v257 = vpop.f32.mrb[0].mxu0
    %258 = vdwg.mxu0
    %259 = vst [vmem:[#allocation5] sm:$0xff] %v253
    %260 = vst [vmem:[#allocation5 + $0x8] sm:$0xff] %v256
    // Predicated region
    $region26: #{tpu_custom_call.1} parent=1 // pred_check
      _
    $region27: #{tpu_custom_call.1} parent=1 // pred_check_branch
      %262 = sbr.rel (0) target = $region29
    $region28: #{tpu_custom_call.1} parent=1 // pred_region
      %s264 = ssub.s32 256, 256
      %265 = vsyncadd [#allocation4], %s264
      %s266 = sshll.u32 [#allocation5], 4
      %s267 = int_to_ptr.vmem [resolvable:$true] %s266
      %272 = dma.vmem_to_hbm [thread:$0]  %s267, 256, %s5, [#allocation4], 128, 128, 8
    $region29: #{tpu_custom_call.1} parent=1 // pred_fallthru
      _
    // Predicated region
    $region30: #{tpu_custom_call.1} parent=1 // pred_check
      _
    $region31: #{tpu_custom_call.1} parent=1 // pred_check_branch
      %274 = sbr.rel (0) target = $region33
    $region32: #{tpu_custom_call.1} parent=1 // pred_region
      %275 = dma.done [#allocation4], 256
    $region33: #{tpu_custom_call.1} parent=1 // pred_fallthru
      _
    %276 = vsyncpa [#allocation3], 1
    %277 = vsyncpa [#allocation4], 1

</llo_original>
